<compile_context>
chip_gen: v7x
topology: tpu7x:2x2x1
jax: 0.10.0
libtpu: 0.0.40
codegen_flags: <defaults>
</compile_context>

<pallas_src>
import functools

import jax
import jax.numpy as jnp
import numpy as np
from jax.experimental import pallas as pl
from jax.experimental.pallas import tpu as pltpu


# ---------------------------------------------------------------------------
# Weight preprocessing (hoist out of per-step loops when calling repeatedly).
# ---------------------------------------------------------------------------
def prepare_params(params, input_dim, compute_dtype=jnp.bfloat16):
    """Returns (wf_x, wf_h, w2_o, b_fused):

      wf_x : (K, 4H, Cin)  rows = [conv1 | conv2] out-channels, x input cols
      wf_h : (K, 4H, H)    same rows, h input cols
      w2_o : (K, 3H, H)    conv2's o input cols
      b_f  : (4H, 1) f32   [b1 | b2]
    """
    w1, b1, w2, b2 = params            # w1: (H, Cin+H, K), w2: (3H, Cin+2H, K)
    Cin = input_dim
    H = w1.shape[0]
    wf_x = jnp.concatenate([w1[:, :Cin, :], w2[:, :Cin, :]], axis=0)       # (4H, Cin, K)
    wf_h = jnp.concatenate([w1[:, Cin:, :], w2[:, Cin + H:, :]], axis=0)   # (4H, H, K)
    w2_o = w2[:, Cin:Cin + H, :]                                           # (3H, H, K)
    wf_x = jnp.transpose(wf_x, (2, 0, 1)).astype(compute_dtype)            # (K, 4H, Cin)
    wf_h = jnp.transpose(wf_h, (2, 0, 1)).astype(compute_dtype)            # (K, 4H, H)
    w2_o = jnp.transpose(w2_o, (2, 0, 1)).astype(compute_dtype)            # (K, 3H, H)
    b_f = jnp.concatenate([b1, b2]).reshape(4 * H, 1).astype(jnp.float32)  # (4H, 1)
    return wf_x, wf_h, w2_o, b_f


# ---------------------------------------------------------------------------
# Fast path: kernel_size == 1 (pointwise conv).  Channels-first, lane dim = L.
# ---------------------------------------------------------------------------
def _pass_cell_pointwise_kernel(x_ref, h_ref, wfx_ref, wfh_ref, w2o_ref, b_ref,
                                y_ref, hn_ref, *, H):
    cdt = wfx_ref.dtype
    xc = x_ref[0].astype(cdt)                         # (Cin, TL)
    hc = h_ref[0].astype(cdt)                         # (H,   TL)

    # fused conv1 + conv2[x|h]: two MXU dots, f32 accumulate
    acc = jnp.dot(wfx_ref[0], xc, preferred_element_type=jnp.float32)
    acc = acc + jnp.dot(wfh_ref[0], hc, preferred_element_type=jnp.float32)
    acc = acc + b_ref[...]                            # (4H, TL) + (4H, 1)

    o = jax.nn.sigmoid(acc[:H])                       # conv1 sigmoid, (H, TL)
    acc2 = acc[H:] + jnp.dot(w2o_ref[0], o.astype(cdt),
                             preferred_element_type=jnp.float32)   # (3H, TL)
    s = jax.nn.sigmoid(acc2)

    # lane-dense stores, no transposes: y = og, h_new = xg + og + hg
    y_ref[0] = s[H:2 * H].astype(y_ref.dtype)
    hn_ref[0] = (s[:H] + s[H:2 * H] + s[2 * H:]).astype(hn_ref.dtype)


# ---------------------------------------------------------------------------
# General path: odd kernel_size > 1, per-batch grid, taps statically unrolled.
# ---------------------------------------------------------------------------
def _pass_cell_taps_kernel(x_ref, h_ref, wfx_ref, wfh_ref, w2o_ref, b_ref,
                           y_ref, hn_ref, *, H, K, L, PAD):
    cdt = wfx_ref.dtype
    xc = x_ref[0].astype(cdt)                         # (Cin, L + 2*PAD)
    hc = h_ref[0].astype(cdt)                         # (H,   L + 2*PAD)

    acc = jnp.broadcast_to(b_ref[...], (4 * H, L))
    for t in range(K):                                # static unroll over taps
        acc = acc + jnp.dot(wfx_ref[t], xc[:, t:t + L],
                            preferred_element_type=jnp.float32)
        acc = acc + jnp.dot(wfh_ref[t], hc[:, t:t + L],
                            preferred_element_type=jnp.float32)

    o = jax.nn.sigmoid(acc[:H])                       # (H, L)
    if PAD > 0:                                       # replicate-pad o along L
        o_p = jnp.concatenate(
            [jnp.broadcast_to(o[:, :1], (H, PAD)), o,
             jnp.broadcast_to(o[:, L - 1:L], (H, PAD))], axis=1)
    else:
        o_p = o
    o_p = o_p.astype(cdt)

    acc2 = acc[H:]
    for t in range(K):
        acc2 = acc2 + jnp.dot(w2o_ref[t], o_p[:, t:t + L],
                              preferred_element_type=jnp.float32)
    s = jax.nn.sigmoid(acc2)

    y_ref[0] = s[H:2 * H].astype(y_ref.dtype)
    hn_ref[0] = (s[:H] + s[H:2 * H] + s[2 * H:]).astype(hn_ref.dtype)


# ---------------------------------------------------------------------------
# Wrapper
# ---------------------------------------------------------------------------
def conv1d_pass_cell_2_v2(x, cur_state, params, kernel_size=1,
                          compute_dtype=jnp.bfloat16, out_dtype=jnp.float32,
                          tile_l=1024, params_prepared=False):
    """x: (B, input_dim, L); cur_state = (c, h) with h: (B, hidden_dim, L).

    compute_dtype: dtype of the MXU matmul inputs (accumulation is always f32).
    out_dtype:     dtype of y / h_new (f32 matches PyTorch; bf16 halves writeback).
    params:        raw (w1, b1, w2, b2) or the output of prepare_params()
                   when params_prepared=True (hoist the prep out of loops).
    """
    c, h = cur_state
    B, Cin, L = x.shape
    H = h.shape[1]
    K = kernel_size
    PAD = K // 2

    if params_prepared:
        wf_x, wf_h, w2_o, b_f = params
    else:
        wf_x, wf_h, w2_o, b_f = prepare_params(params, Cin, compute_dtype)

    if K == 1:
        # ---- tile_l selection: VMEM-budgeted, lane-dense, >= 2 grid cells ----
        in_b = x.dtype.itemsize
        out_b = np.dtype(out_dtype).itemsize
        # double-buffered in/out streams + f32 intermediates, per output column
        col_bytes = 2 * ((Cin + H) * in_b + 2 * H * out_b) + (4 * H + 3 * H + 2 * H) * 4
        vmem_budget = 8 * 1024 * 1024            # ~half of v5e's scoped default
        max_tl = max(128, (vmem_budget // col_bytes) // 128 * 128)
        tl = min(tile_l, L, max_tl)
        if B == 1 and tl == L and L > 128:       # give both v7x TCs work
            tl = min(L, ((pl.cdiv(L, 2) + 127) // 128) * 128)
        if tl < L:                               # tiled blocks must be lane-dense
            tl = max(128, (tl // 128) * 128)
            if tl >= L:
                tl = L
        grid = (B, pl.cdiv(L, tl))

        y, h_new = pl.pallas_call(
            functools.partial(_pass_cell_pointwise_kernel, H=H),
            out_shape=(jax.ShapeDtypeStruct((B, H, L), out_dtype),
                       jax.ShapeDtypeStruct((B, H, L), out_dtype)),
            grid_spec=pltpu.PrefetchScalarGridSpec(
                num_scalar_prefetch=0,
                grid=grid,
                in_specs=[
                    pl.BlockSpec((1, Cin, tl), lambda b, l: (b, 0, l)),      # x
                    pl.BlockSpec((1, H, tl), lambda b, l: (b, 0, l)),        # h
                    pl.BlockSpec((1, 4 * H, Cin), lambda b, l: (0, 0, 0)),   # Wf_x
                    pl.BlockSpec((1, 4 * H, H), lambda b, l: (0, 0, 0)),     # Wf_h
                    pl.BlockSpec((1, 3 * H, H), lambda b, l: (0, 0, 0)),     # W2_o
                    pl.BlockSpec((4 * H, 1), lambda b, l: (0, 0)),           # bias
                ],
                out_specs=[
                    pl.BlockSpec((1, H, tl), lambda b, l: (b, 0, l)),        # y
                    pl.BlockSpec((1, H, tl), lambda b, l: (b, 0, l)),        # h_new
                ],
            ),
            compiler_params=pltpu.CompilerParams(
                dimension_semantics=("parallel", "parallel")),
        )(x, h, wf_x, wf_h, w2_o, b_f)
    else:
        # ---- general odd K: per-batch grid, replicate padding along L ----
        # TODO(synk): halo-tile L (grid over (B, L_tiles)) and move the tap
        # shift into the DMA for very long sequences (v7x 64 MiB VMEM hazard).
        Lp = L + 2 * PAD
        xp = jnp.pad(x, ((0, 0), (0, 0), (PAD, PAD)), mode='edge')
        hp = jnp.pad(h, ((0, 0), (0, 0), (PAD, PAD)), mode='edge')
        kern = functools.partial(_pass_cell_taps_kernel, H=H, K=K, L=L, PAD=PAD)
        y, h_new = pl.pallas_call(
            kern,
            out_shape=(jax.ShapeDtypeStruct((B, H, L), out_dtype),
                       jax.ShapeDtypeStruct((B, H, L), out_dtype)),
            grid_spec=pltpu.PrefetchScalarGridSpec(
                num_scalar_prefetch=0,
                grid=(B,),
                in_specs=[
                    pl.BlockSpec((1, Cin, Lp), lambda b: (b, 0, 0)),         # x (padded)
                    pl.BlockSpec((1, H, Lp), lambda b: (b, 0, 0)),           # h (padded)
                    pl.BlockSpec((K, 4 * H, Cin), lambda b: (0, 0, 0)),      # Wf_x
                    pl.BlockSpec((K, 4 * H, H), lambda b: (0, 0, 0)),        # Wf_h
                    pl.BlockSpec((K, 3 * H, H), lambda b: (0, 0, 0)),        # W2_o
                    pl.BlockSpec((4 * H, 1), lambda b: (0, 0)),              # bias
                ],
                out_specs=[
                    pl.BlockSpec((1, H, L), lambda b: (b, 0, 0)),            # y
                    pl.BlockSpec((1, H, L), lambda b: (b, 0, 0)),            # h_new
                ],
            ),
            compiler_params=pltpu.CompilerParams(
                dimension_semantics=("parallel",)),
        )(xp, hp, wf_x, wf_h, w2_o, b_f)

    # Replicate the PyTorch layout quirk: if o.squeeze(0).shape[0] == hidden_dim
    # the outputs are permuted (2, 1, 0).  NOTE: this silently changes the
    # output layout whenever batch == 1 or batch == hidden_dim (kept faithful).
    squeezed_dim0 = H if B == 1 else B
    if squeezed_dim0 == H:
        y = jnp.transpose(y, (2, 1, 0))
        h_new = jnp.transpose(h_new, (2, 1, 0))

    return y, (c, h_new)


# ---------------------------------------------------------------------------
# Pure-JAX reference (any odd K, replicate padding), pre-quirk layout.
# ---------------------------------------------------------------------------
def _reference(x, h, params, K):
    w1, b1, w2, b2 = params
    H = h.shape[1]
    PAD = K // 2

    def conv1d_repl(inp, w, b):
        Lr = inp.shape[2]
        ip = jnp.pad(inp, ((0, 0), (0, 0), (PAD, PAD)), mode='edge')
        out = jnp.zeros((inp.shape[0], w.shape[0], Lr), jnp.float32) + b[None, :, None]
        for t in range(K):
            out = out + jnp.einsum('oc,bcl->bol', w[:, :, t], ip[:, :, t:t + Lr])
        return out

    o = jax.nn.sigmoid(conv1d_repl(jnp.concatenate([x, h], axis=1), w1, b1))
    cc2 = conv1d_repl(jnp.concatenate([x, o, h], axis=1), w2, b2)
    xg = jax.nn.sigmoid(cc2[:, :H])
    og = jax.nn.sigmoid(cc2[:, H:2 * H])
    hg = jax.nn.sigmoid(cc2[:, 2 * H:])
    return og, xg + og + hg


if __name__ == "__main__":
    input_dim, hidden_dim = 4, 32
    B, L = 2, 16                       # B != 1 and B != hidden_dim -> no quirk

    key = jax.random.PRNGKey(0)

    for kernel_size in (1, 3):
        key, k1, k2, k3, k4, k5, k6 = jax.random.split(key, 7)

        # deterministic "Conv1d-like" parameter init (uniform +/- 1/sqrt(fan_in*k))
        fan1 = (input_dim + hidden_dim) * kernel_size
        fan2 = (input_dim + 2 * hidden_dim) * kernel_size
        bnd1 = 1.0 / (fan1 ** 0.5)
        bnd2 = 1.0 / (fan2 ** 0.5)
        w1 = jax.random.uniform(k1, (hidden_dim, input_dim + hidden_dim, kernel_size),
                                jnp.float32, -bnd1, bnd1)
        b1 = jax.random.uniform(k2, (hidden_dim,), jnp.float32, -bnd1, bnd1)
        w2 = jax.random.uniform(k3, (3 * hidden_dim, input_dim + 2 * hidden_dim, kernel_size),
                                jnp.float32, -bnd2, bnd2)
        b2 = jax.random.uniform(k4, (3 * hidden_dim,), jnp.float32, -bnd2, bnd2)
        params = (w1, b1, w2, b2)

        x = jax.random.normal(k5, (B, input_dim, L), jnp.float32)
        c0 = None
        # random hidden state: exercises the h columns of the fused weights
        h0 = jax.random.normal(k6, (B, hidden_dim, L), jnp.float32)

        # exact-precision path (f32 MXU inputs) for a tight reference check
        y32, (_, h32) = conv1d_pass_cell_2_v2(x, (c0, h0), params, kernel_size,
                                              compute_dtype=jnp.float32)
        # default fast path (bf16 MXU inputs, f32 accumulate / f32 elementwise)
        y, (c_out, h_out) = conv1d_pass_cell_2_v2(x, (c0, h0), params, kernel_size)
        jax.block_until_ready((y32, h32, y, h_out))

        y_ref, h_ref = _reference(x, h0, params, kernel_size)
        assert jnp.allclose(y32, y_ref, atol=1e-5, rtol=1e-5), kernel_size
        assert jnp.allclose(h32, h_ref, atol=1e-5, rtol=1e-5), kernel_size
        assert jnp.allclose(y, y_ref, atol=2e-2, rtol=2e-2), kernel_size
        assert jnp.allclose(h_out, h_ref, atol=2e-2, rtol=2e-2), kernel_size

    print("KERNEL_OK")
</pallas_src>

<mosaic_0001>
module attributes {stable_mosaic.version = 11 : i64} {
  func.func @_pass_cell_pointwise_kernel(%arg0: i32, %arg1: i32, %arg2: memref<1x4x16xf32, #tpu.memory_space<vmem>>, %arg3: memref<1x32x16xf32, #tpu.memory_space<vmem>>, %arg4: memref<1x128x4xf32, #tpu.memory_space<vmem>>, %arg5: memref<1x128x32xf32, #tpu.memory_space<vmem>>, %arg6: memref<1x96x32xf32, #tpu.memory_space<vmem>>, %arg7: memref<128x1xf32, #tpu.memory_space<vmem>>, %arg8: memref<1x32x16xf32, #tpu.memory_space<vmem>>, %arg9: memref<1x32x16xf32, #tpu.memory_space<vmem>>) attributes {dimension_semantics = [#tpu.dimension_semantics<parallel>, #tpu.dimension_semantics<parallel>], iteration_bounds = array<i64: 2, 1>, scalar_prefetch = 0 : i64, scratch_operands = 0 : i64, tpu.core_type = #tpu.core_type<tc>, window_params = [{transform_indices = @transform_0, window_bounds = array<i64: 1, 4, 16>}, {transform_indices = @transform_1, window_bounds = array<i64: 1, 32, 16>}, {pipeline_mode = #tpu.pipeline_mode<synchronous>, transform_indices = @transform_2, window_bounds = array<i64: 1, 128, 4>}, {pipeline_mode = #tpu.pipeline_mode<synchronous>, transform_indices = @transform_3, window_bounds = array<i64: 1, 128, 32>}, {pipeline_mode = #tpu.pipeline_mode<synchronous>, transform_indices = @transform_4, window_bounds = array<i64: 1, 96, 32>}, {pipeline_mode = #tpu.pipeline_mode<synchronous>, transform_indices = @transform_5, window_bounds = array<i64: 128, 1>}, {transform_indices = @transform_6, window_bounds = array<i64: 1, 32, 16>}, {transform_indices = @transform_7, window_bounds = array<i64: 1, 32, 16>}]} {
    %c0 = arith.constant 0 : index
    %c0_0 = arith.constant 0 : index
    %c0_1 = arith.constant 0 : index
    %0 = vector.load %arg2[%c0, %c0_0, %c0_1] : memref<1x4x16xf32, #tpu.memory_space<vmem>>, vector<1x4x16xf32>
    %1 = vector.shape_cast %0 : vector<1x4x16xf32> to vector<4x16xf32>
    %c0_2 = arith.constant 0 : index
    %c0_3 = arith.constant 0 : index
    %c0_4 = arith.constant 0 : index
    %2 = vector.load %arg3[%c0_2, %c0_3, %c0_4] : memref<1x32x16xf32, #tpu.memory_space<vmem>>, vector<1x32x16xf32>
    %3 = vector.shape_cast %2 : vector<1x32x16xf32> to vector<32x16xf32>
    %c0_5 = arith.constant 0 : index
    %c0_6 = arith.constant 0 : index
    %c0_7 = arith.constant 0 : index
    %4 = vector.load %arg4[%c0_5, %c0_6, %c0_7] : memref<1x128x4xf32, #tpu.memory_space<vmem>>, vector<1x128x4xf32>
    %5 = vector.shape_cast %4 : vector<1x128x4xf32> to vector<128x4xf32>
    %cst = arith.constant dense<0.000000e+00> : vector<128x16xf32>
    %6 = tpu.matmul %5, %1, %cst {dimension_numbers = #tpu.dot_dimension_numbers<[1], [0], [0], [1], [0, 0, 1, 1], [], []>} : vector<128x4xf32>, vector<4x16xf32>, vector<128x16xf32> -> vector<128x16xf32>
    %c0_8 = arith.constant 0 : index
    %c0_9 = arith.constant 0 : index
    %c0_10 = arith.constant 0 : index
    %7 = vector.load %arg5[%c0_8, %c0_9, %c0_10] : memref<1x128x32xf32, #tpu.memory_space<vmem>>, vector<1x128x32xf32>
    %8 = vector.shape_cast %7 : vector<1x128x32xf32> to vector<128x32xf32>
    %cst_11 = arith.constant dense<0.000000e+00> : vector<128x16xf32>
    %9 = tpu.matmul %8, %3, %cst_11 {dimension_numbers = #tpu.dot_dimension_numbers<[1], [0], [0], [1], [0, 0, 1, 1], [], []>} : vector<128x32xf32>, vector<32x16xf32>, vector<128x16xf32> -> vector<128x16xf32>
    %10 = arith.addf %6, %9 : vector<128x16xf32>
    %c0_12 = arith.constant 0 : index
    %c0_13 = arith.constant 0 : index
    %11 = vector.load %arg7[%c0_12, %c0_13] : memref<128x1xf32, #tpu.memory_space<vmem>>, vector<128x1xf32>
    %12 = vector.broadcast %11 : vector<128x1xf32> to vector<128x16xf32>
    %13 = arith.addf %10, %12 : vector<128x16xf32>
    %14 = vector.extract_strided_slice %13 {offsets = [0, 0], sizes = [32, 16], strides = [1, 1]} : vector<128x16xf32> to vector<32x16xf32>
    %15 = arith.negf %14 : vector<32x16xf32>
    %16 = math.exp %15 : vector<32x16xf32>
    %cst_14 = arith.constant 1.000000e+00 : f32
    %17 = vector.broadcast %cst_14 : f32 to vector<32x16xf32>
    %18 = arith.addf %17, %16 : vector<32x16xf32>
    %19 = arith.divf %17, %18 : vector<32x16xf32>
    %20 = vector.extract_strided_slice %13 {offsets = [32, 0], sizes = [96, 16], strides = [1, 1]} : vector<128x16xf32> to vector<96x16xf32>
    %c0_15 = arith.constant 0 : index
    %c0_16 = arith.constant 0 : index
    %c0_17 = arith.constant 0 : index
    %21 = vector.load %arg6[%c0_15, %c0_16, %c0_17] : memref<1x96x32xf32, #tpu.memory_space<vmem>>, vector<1x96x32xf32>
    %22 = vector.shape_cast %21 : vector<1x96x32xf32> to vector<96x32xf32>
    %cst_18 = arith.constant dense<0.000000e+00> : vector<96x16xf32>
    %23 = tpu.matmul %22, %19, %cst_18 {dimension_numbers = #tpu.dot_dimension_numbers<[1], [0], [0], [1], [0, 0, 1, 1], [], []>} : vector<96x32xf32>, vector<32x16xf32>, vector<96x16xf32> -> vector<96x16xf32>
    %24 = arith.addf %20, %23 : vector<96x16xf32>
    %25 = arith.negf %24 : vector<96x16xf32>
    %26 = math.exp %25 : vector<96x16xf32>
    %cst_19 = arith.constant 1.000000e+00 : f32
    %27 = vector.broadcast %cst_19 : f32 to vector<96x16xf32>
    %28 = arith.addf %27, %26 : vector<96x16xf32>
    %29 = arith.divf %27, %28 : vector<96x16xf32>
    %30 = vector.extract_strided_slice %29 {offsets = [32, 0], sizes = [32, 16], strides = [1, 1]} : vector<96x16xf32> to vector<32x16xf32>
    %c0_20 = arith.constant 0 : index
    %c0_21 = arith.constant 0 : index
    %c0_22 = arith.constant 0 : index
    %31 = vector.load %arg8[%c0_20, %c0_21, %c0_22] : memref<1x32x16xf32, #tpu.memory_space<vmem>>, vector<1x32x16xf32>
    %32 = vector.shape_cast %31 : vector<1x32x16xf32> to vector<32x16xf32>
    %33 = vector.shape_cast %30 : vector<32x16xf32> to vector<1x32x16xf32>
    tpu.vector_store %arg8[%c0_20, %c0_21, %c0_22], %33 {strides = array<i32>} : memref<1x32x16xf32, #tpu.memory_space<vmem>>, vector<1x32x16xf32>,
    %34 = vector.extract_strided_slice %29 {offsets = [0, 0], sizes = [32, 16], strides = [1, 1]} : vector<96x16xf32> to vector<32x16xf32>
    %35 = vector.extract_strided_slice %29 {offsets = [32, 0], sizes = [32, 16], strides = [1, 1]} : vector<96x16xf32> to vector<32x16xf32>
    %36 = arith.addf %34, %35 : vector<32x16xf32>
    %37 = vector.extract_strided_slice %29 {offsets = [64, 0], sizes = [32, 16], strides = [1, 1]} : vector<96x16xf32> to vector<32x16xf32>
    %38 = arith.addf %36, %37 : vector<32x16xf32>
    %c0_23 = arith.constant 0 : index
    %c0_24 = arith.constant 0 : index
    %c0_25 = arith.constant 0 : index
    %39 = vector.load %arg9[%c0_23, %c0_24, %c0_25] : memref<1x32x16xf32, #tpu.memory_space<vmem>>, vector<1x32x16xf32>
    %40 = vector.shape_cast %39 : vector<1x32x16xf32> to vector<32x16xf32>
    %41 = vector.shape_cast %38 : vector<32x16xf32> to vector<1x32x16xf32>
    tpu.vector_store %arg9[%c0_23, %c0_24, %c0_25], %41 {strides = array<i32>} : memref<1x32x16xf32, #tpu.memory_space<vmem>>, vector<1x32x16xf32>,
    return
  }
  func.func @transform_0(%arg0: i32, %arg1: i32) -> (i32, i32, i32) {
    %c0_i32 = arith.constant 0 : i32
    %c0_i32_0 = arith.constant 0 : i32
    return %arg0, %c0_i32, %arg1 : i32, i32, i32
  }
  func.func @transform_1(%arg0: i32, %arg1: i32) -> (i32, i32, i32) {
    %c0_i32 = arith.constant 0 : i32
    %c0_i32_0 = arith.constant 0 : i32
    return %arg0, %c0_i32, %arg1 : i32, i32, i32
  }
  func.func @transform_2(%arg0: i32, %arg1: i32) -> (i32, i32, i32) {
    %c0_i32 = arith.constant 0 : i32
    %c0_i32_0 = arith.constant 0 : i32
    %c0_i32_1 = arith.constant 0 : i32
    %c0_i32_2 = arith.constant 0 : i32
    return %c0_i32, %c0_i32_0, %c0_i32_1 : i32, i32, i32
  }
  func.func @transform_3(%arg0: i32, %arg1: i32) -> (i32, i32, i32) {
    %c0_i32 = arith.constant 0 : i32
    %c0_i32_0 = arith.constant 0 : i32
    %c0_i32_1 = arith.constant 0 : i32
    %c0_i32_2 = arith.constant 0 : i32
    return %c0_i32, %c0_i32_0, %c0_i32_1 : i32, i32, i32
  }
  func.func @transform_4(%arg0: i32, %arg1: i32) -> (i32, i32, i32) {
    %c0_i32 = arith.constant 0 : i32
    %c0_i32_0 = arith.constant 0 : i32
    %c0_i32_1 = arith.constant 0 : i32
    %c0_i32_2 = arith.constant 0 : i32
    return %c0_i32, %c0_i32_0, %c0_i32_1 : i32, i32, i32
  }
  func.func @transform_5(%arg0: i32, %arg1: i32) -> (i32, i32) {
    %c0_i32 = arith.constant 0 : i32
    %c0_i32_0 = arith.constant 0 : i32
    %c0_i32_1 = arith.constant 0 : i32
    return %c0_i32, %c0_i32_0 : i32, i32
  }
  func.func @transform_6(%arg0: i32, %arg1: i32) -> (i32, i32, i32) {
    %c0_i32 = arith.constant 0 : i32
    %c0_i32_0 = arith.constant 0 : i32
    return %arg0, %c0_i32, %arg1 : i32, i32, i32
  }
  func.func @transform_7(%arg0: i32, %arg1: i32) -> (i32, i32, i32) {
    %c0_i32 = arith.constant 0 : i32
    %c0_i32_0 = arith.constant 0 : i32
    return %arg0, %c0_i32, %arg1 : i32, i32, i32
  }
}

</mosaic_0001>

<llo_original>
// kernel: tpu_custom_call.1
$region0: #{tpu_custom_call.1}
  #allocation0 [shape = 'u32[]', space=smem, size = 0x4, offset = 0x4, fixed_abs, tag = 'smem constant byte address 0x4 - core index']
  #allocation1 [shape = 'u32[144,128]{1,0:T(1,128)}', space=vmem, size = 0x12000, scoped, tag = 'internal scratch']
  %s0 = inlined_call_operand.vmem [shape: f32[2,4,16], index: 0, kind: input, shape index: {}]
  %s1 = inlined_call_operand.vmem [shape: f32[2,32,16], index: 1, kind: input, shape index: {}]
  %s2 = inlined_call_operand.vmem [shape: f32[1,128,4], index: 2, kind: input, shape index: {}]
  %s3 = inlined_call_operand.vmem [shape: f32[1,128,32], index: 3, kind: input, shape index: {}]
  %s4 = inlined_call_operand.vmem [shape: f32[1,96,32], index: 4, kind: input, shape index: {}]
  %s5 = inlined_call_operand.vmem [shape: f32[128,1], index: 5, kind: input, shape index: {}]
  %s6 = inlined_call_operand.vmem [shape: f32[2,32,16], index: 6, kind: output, shape index: {0}]
  %s7 = inlined_call_operand.vmem [shape: f32[2,32,16], index: 7, kind: output, shape index: {1}]
  %8 = xla_tuple %s6, %s7
  %s9 = sld [smem:[#allocation0]]
  $region65: #{tpu_custom_call.1} parent=0
    _
  %s11 = ssub.s32 1, %s9
  %s12 = scalar_select 0, %s11, %s9
  loop: start=0, step=1, limit=4
  $region2: #{tpu_custom_call.1} parent=0 // loop_pre_header
    _
  $region3: #{tpu_custom_call.1} parent=0 // loop_header
    %s14 = sphi 0, %s18
    %p15 = scmp.ge.s32.totalorder %s14, 4
    %s21 = sphi 0, %s33
    %s22 = sphi 0, %s29
    %s23 = sphi 0, %s21
    %s24 = sphi 0, %s22
    %s25 = sphi 0, %s23
    %s26 = sphi 0, %s24
    %s38 = sphi 0, %s40
    %s41 = sphi 0, %s38
    %s42 = sphi 0, %s41
    %s58 = sphi 0, %s42
    %s66 = sphi 0, %s68
    %s69 = sphi 0, %s66
    %s70 = sphi 0, %s69
    %s86 = sphi 0, %s70
    %s90 = sphi 0, %s90
    %s92 = sphi 0, %s90
    %s93 = sphi 0, %s92
    %s107 = sphi 0, %s93
    %s111 = sphi 0, %s111
    %s113 = sphi 0, %s111
    %s114 = sphi 0, %s113
    %s128 = sphi 0, %s114
    %s132 = sphi 0, %s132
    %s134 = sphi 0, %s132
    %s135 = sphi 0, %s134
    %s149 = sphi 0, %s135
    %s153 = sphi 0, %s153
    %s155 = sphi 0, %s153
    %s156 = sphi 0, %s155
    %s170 = sphi 0, %s156
    %s178 = sphi 0, %s180
    %s181 = sphi 0, %s178
    %s182 = sphi 0, %s181
    %s198 = sphi 0, %s182
    %s206 = sphi 0, %s208
    %s209 = sphi 0, %s206
    %s210 = sphi 0, %s209
    %s226 = sphi 0, %s210
  $region4: #{tpu_custom_call.1} parent=0 // loop_header_branch
    %17 = sbr.rel (%p15) target = $region8
  $region5: #{tpu_custom_call.1} parent=0 // loop_body
    %s19 = ssub.s32 %s14, 1
    %s20 = ssub.s32 %s14, 2
    %s27 = sadd.s32 1, %s22
    %p28 = scmp.ge.s32.totalorder %s27, 1
    %s29 = scalar_select %p28, 0, %s27
    %s30 = sadd.s32 1, %s21
    %s31 = scalar_select %p28, %s30, %s21
    %p32 = scmp.ge.s32.totalorder %s31, 2
    %s33 = scalar_select %p32, 0, %s31
    %s34 = ssub.s32 %s21, %s33
    %s35 = ssub.s32 %s22, %s29
    %s36 = sor.u32 %s34, %s35
    %p37 = scmp.eq.s32.totalorder %s36, 0
    %s39 = sadd.s32 %s38, 1
    %s40 = scalar_select %p37, %s38, %s39
    %p43 = pneg %p37
    %p44 = scmp.eq.s32.totalorder %s14, 1
    %p45 = por %p43, %p44
    %p46 = scmp.ne.s32.totalorder %s38, %s41
    %p47 = scmp.eq.s32.totalorder %s14, 0
    %p48 = por %p46, %p47
    %p49 = scmp.ne.s32.totalorder %s38, %s41
    %p50 = scmp.eq.s32.totalorder %s19, 1
    %p51 = por %p49, %p50
    %p52 = scmp.ne.s32.totalorder %s41, %s42
    %p53 = scmp.eq.s32.totalorder %s19, 0
    %p54 = por %p52, %p53
    %p55 = scmp.ne.s32.totalorder %s41, %s42
    %p56 = scmp.eq.s32.totalorder %s20, 1
    %p57 = por %p55, %p56
    %p59 = scmp.ne.s32.totalorder %s42, %s58
    %p60 = scmp.eq.s32.totalorder %s20, 0
    %p61 = por %p59, %p60
    %s62 = ssub.s32 %s21, %s33
    %s63 = ssub.s32 %s22, %s29
    %s64 = sor.u32 %s62, %s63
    %p65 = scmp.eq.s32.totalorder %s64, 0
    %s67 = sadd.s32 %s66, 1
    %s68 = scalar_select %p65, %s66, %s67
    %p71 = pneg %p65
    %p72 = scmp.eq.s32.totalorder %s14, 1
    %p73 = por %p71, %p72
    %p74 = scmp.ne.s32.totalorder %s66, %s69
    %p75 = scmp.eq.s32.totalorder %s14, 0
    %p76 = por %p74, %p75
    %p77 = scmp.ne.s32.totalorder %s66, %s69
    %p78 = scmp.eq.s32.totalorder %s19, 1
    %p79 = por %p77, %p78
    %p80 = scmp.ne.s32.totalorder %s69, %s70
    %p81 = scmp.eq.s32.totalorder %s19, 0
    %p82 = por %p80, %p81
    %p83 = scmp.ne.s32.totalorder %s69, %s70
    %p84 = scmp.eq.s32.totalorder %s20, 1
    %p85 = por %p83, %p84
    %p87 = scmp.ne.s32.totalorder %s70, %s86
    %p88 = scmp.eq.s32.totalorder %s20, 0
    %p89 = por %p87, %p88
    %s91 = sadd.s32 %s90, 1
    %p94 = scmp.eq.s32.totalorder %s14, 1
    %p95 = scmp.ne.s32.totalorder %s90, %s92
    %p96 = scmp.eq.s32.totalorder %s14, 0
    %p97 = por %p95, %p96
    %p98 = scmp.ne.s32.totalorder %s90, %s92
    %p99 = scmp.eq.s32.totalorder %s19, 1
    %p100 = por %p98, %p99
    %p101 = scmp.ne.s32.totalorder %s92, %s93
    %p102 = scmp.eq.s32.totalorder %s19, 0
    %p103 = por %p101, %p102
    %p104 = scmp.ne.s32.totalorder %s92, %s93
    %p105 = scmp.eq.s32.totalorder %s20, 1
    %p106 = por %p104, %p105
    %p108 = scmp.ne.s32.totalorder %s93, %s107
    %p109 = scmp.eq.s32.totalorder %s20, 0
    %p110 = por %p108, %p109
    %s112 = sadd.s32 %s111, 1
    %p115 = scmp.eq.s32.totalorder %s14, 1
    %p116 = scmp.ne.s32.totalorder %s111, %s113
    %p117 = scmp.eq.s32.totalorder %s14, 0
    %p118 = por %p116, %p117
    %p119 = scmp.ne.s32.totalorder %s111, %s113
    %p120 = scmp.eq.s32.totalorder %s19, 1
    %p121 = por %p119, %p120
    %p122 = scmp.ne.s32.totalorder %s113, %s114
    %p123 = scmp.eq.s32.totalorder %s19, 0
    %p124 = por %p122, %p123
    %p125 = scmp.ne.s32.totalorder %s113, %s114
    %p126 = scmp.eq.s32.totalorder %s20, 1
    %p127 = por %p125, %p126
    %p129 = scmp.ne.s32.totalorder %s114, %s128
    %p130 = scmp.eq.s32.totalorder %s20, 0
    %p131 = por %p129, %p130
    %s133 = sadd.s32 %s132, 1
    %p136 = scmp.eq.s32.totalorder %s14, 1
    %p137 = scmp.ne.s32.totalorder %s132, %s134
    %p138 = scmp.eq.s32.totalorder %s14, 0
    %p139 = por %p137, %p138
    %p140 = scmp.ne.s32.totalorder %s132, %s134
    %p141 = scmp.eq.s32.totalorder %s19, 1
    %p142 = por %p140, %p141
    %p143 = scmp.ne.s32.totalorder %s134, %s135
    %p144 = scmp.eq.s32.totalorder %s19, 0
    %p145 = por %p143, %p144
    %p146 = scmp.ne.s32.totalorder %s134, %s135
    %p147 = scmp.eq.s32.totalorder %s20, 1
    %p148 = por %p146, %p147
    %p150 = scmp.ne.s32.totalorder %s135, %s149
    %p151 = scmp.eq.s32.totalorder %s20, 0
    %p152 = por %p150, %p151
    %s154 = sadd.s32 %s153, 1
    %p157 = scmp.eq.s32.totalorder %s14, 1
    %p158 = scmp.ne.s32.totalorder %s153, %s155
    %p159 = scmp.eq.s32.totalorder %s14, 0
    %p160 = por %p158, %p159
    %p161 = scmp.ne.s32.totalorder %s153, %s155
    %p162 = scmp.eq.s32.totalorder %s19, 1
    %p163 = por %p161, %p162
    %p164 = scmp.ne.s32.totalorder %s155, %s156
    %p165 = scmp.eq.s32.totalorder %s19, 0
    %p166 = por %p164, %p165
    %p167 = scmp.ne.s32.totalorder %s155, %s156
    %p168 = scmp.eq.s32.totalorder %s20, 1
    %p169 = por %p167, %p168
    %p171 = scmp.ne.s32.totalorder %s156, %s170
    %p172 = scmp.eq.s32.totalorder %s20, 0
    %p173 = por %p171, %p172
    %s174 = ssub.s32 %s21, %s33
    %s175 = ssub.s32 %s22, %s29
    %s176 = sor.u32 %s174, %s175
    %p177 = scmp.eq.s32.totalorder %s176, 0
    %s179 = sadd.s32 %s178, 1
    %s180 = scalar_select %p177, %s178, %s179
    %p183 = pneg %p177
    %p184 = scmp.eq.s32.totalorder %s14, 1
    %p185 = por %p183, %p184
    %p186 = scmp.ne.s32.totalorder %s178, %s181
    %p187 = scmp.eq.s32.totalorder %s14, 0
    %p188 = por %p186, %p187
    %p189 = scmp.ne.s32.totalorder %s178, %s181
    %p190 = scmp.eq.s32.totalorder %s19, 1
    %p191 = por %p189, %p190
    %p192 = scmp.ne.s32.totalorder %s181, %s182
    %p193 = scmp.eq.s32.totalorder %s19, 0
    %p194 = por %p192, %p193
    %p195 = scmp.ne.s32.totalorder %s181, %s182
    %p196 = scmp.eq.s32.totalorder %s20, 1
    %p197 = por %p195, %p196
    %p199 = scmp.ne.s32.totalorder %s182, %s198
    %p200 = scmp.eq.s32.totalorder %s20, 0
    %p201 = por %p199, %p200
    %s202 = ssub.s32 %s21, %s33
    %s203 = ssub.s32 %s22, %s29
    %s204 = sor.u32 %s202, %s203
    %p205 = scmp.eq.s32.totalorder %s204, 0
    %s207 = sadd.s32 %s206, 1
    %s208 = scalar_select %p205, %s206, %s207
    %p211 = pneg %p205
    %p212 = scmp.eq.s32.totalorder %s14, 1
    %p213 = por %p211, %p212
    %p214 = scmp.ne.s32.totalorder %s206, %s209
    %p215 = scmp.eq.s32.totalorder %s14, 0
    %p216 = por %p214, %p215
    %p217 = scmp.ne.s32.totalorder %s206, %s209
    %p218 = scmp.eq.s32.totalorder %s19, 1
    %p219 = por %p217, %p218
    %p220 = scmp.ne.s32.totalorder %s209, %s210
    %p221 = scmp.eq.s32.totalorder %s19, 0
    %p222 = por %p220, %p221
    %p223 = scmp.ne.s32.totalorder %s209, %s210
    %p224 = scmp.eq.s32.totalorder %s20, 1
    %p225 = por %p223, %p224
    %p227 = scmp.ne.s32.totalorder %s210, %s226
    %p228 = scmp.eq.s32.totalorder %s20, 0
    %p229 = por %p227, %p228
    %p230 = scmp.le.s32.totalorder 1, %s14
    %p231 = scmp.lt.s32.totalorder %s14, 3
    %p232 = pnand %p230, %p231
    %p233 = pneg %p232
    // Predicated region
    $region9: #{tpu_custom_call.1} parent=5 // pred_check
      _
    $region10: #{tpu_custom_call.1} parent=5 // pred_check_branch
      %235 = sbr.rel (%p232) target = $region12
    $region11: #{tpu_custom_call.1} parent=5 // pred_region
      %s236 = ssub.s32 %s14, 1
      // Predicated region
      $region13: #{tpu_custom_call.1} parent=11 // pred_check
        %p237 = pneg %p103
      $region14: #{tpu_custom_call.1} parent=11 // pred_check_branch
        %239 = sbr.rel (%p237) target = $region16
      $region15: #{tpu_custom_call.1} parent=11 // pred_region
        _
      $region16: #{tpu_custom_call.1} parent=11 // pred_fallthru
        _
      // Predicated region
      $region17: #{tpu_custom_call.1} parent=11 // pred_check
        %p240 = pneg %p124
      $region18: #{tpu_custom_call.1} parent=11 // pred_check_branch
        %242 = sbr.rel (%p240) target = $region20
      $region19: #{tpu_custom_call.1} parent=11 // pred_region
        _
      $region20: #{tpu_custom_call.1} parent=11 // pred_fallthru
        _
      // Predicated region
      $region21: #{tpu_custom_call.1} parent=11 // pred_check
        %p243 = pneg %p145
      $region22: #{tpu_custom_call.1} parent=11 // pred_check_branch
        %245 = sbr.rel (%p243) target = $region24
      $region23: #{tpu_custom_call.1} parent=11 // pred_region
        _
      $region24: #{tpu_custom_call.1} parent=11 // pred_fallthru
        _
      // Predicated region
      $region25: #{tpu_custom_call.1} parent=11 // pred_check
        %p246 = pneg %p166
      $region26: #{tpu_custom_call.1} parent=11 // pred_check_branch
        %248 = sbr.rel (%p246) target = $region28
      $region27: #{tpu_custom_call.1} parent=11 // pred_region
        _
      $region28: #{tpu_custom_call.1} parent=11 // pred_fallthru
        _
    $region12: #{tpu_custom_call.1} parent=5 // pred_fallthru
      _
    %p249 = scmp.lt.s32.totalorder %s14, 2
    // Predicated region
    $region29: #{tpu_custom_call.1} parent=5 // pred_check
      %p250 = pneg %p249
    $region30: #{tpu_custom_call.1} parent=5 // pred_check_branch
      %252 = sbr.rel (%p250) target = $region32
    $region31: #{tpu_custom_call.1} parent=5 // pred_region
      // Predicated region
      $region33: #{tpu_custom_call.1} parent=31 // pred_check
        %p253 = pneg %p48
      $region34: #{tpu_custom_call.1} parent=31 // pred_check_branch
        %255 = sbr.rel (%p253) target = $region36
      $region35: #{tpu_custom_call.1} parent=31 // pred_region
        %p256 = scmp.lt.s32.totalorder %s21, 1
        %s257 = scalar_select %p256, %s21, 1
        %p258 = scmp.lt.s32.totalorder %s22, 0
        %s259 = scalar_select %p258, %s22, 0
        %s260 = sadd.s32 %s259, %s257
        %s261 = smul.addr %s260, 4
        %s262 = scalar_lea.vmem %s0, %s261
      $region36: #{tpu_custom_call.1} parent=31 // pred_fallthru
        _
      // Predicated region
      $region37: #{tpu_custom_call.1} parent=31 // pred_check
        %p263 = pneg %p76
      $region38: #{tpu_custom_call.1} parent=31 // pred_check_branch
        %265 = sbr.rel (%p263) target = $region40
      $region39: #{tpu_custom_call.1} parent=31 // pred_region
        %p266 = scmp.lt.s32.totalorder %s21, 1
        %s267 = scalar_select %p266, %s21, 1
        %p268 = scmp.lt.s32.totalorder %s22, 0
        %s269 = scalar_select %p268, %s22, 0
        %s270 = smul.addr %s267, 4
        %s271 = sadd.s32 %s269, %s270
        %s272 = smul.addr %s271, 8
        %s273 = scalar_lea.vmem %s1, %s272
      $region40: #{tpu_custom_call.1} parent=31 // pred_fallthru
        _
    $region32: #{tpu_custom_call.1} parent=5 // pred_fallthru
      _
    %p274 = scmp.le.s32.totalorder 1, %s14
    %p275 = scmp.lt.s32.totalorder %s14, 3
    %p276 = pnand %p274, %p275
    %p277 = pneg %p276
    // Predicated region
    $region41: #{tpu_custom_call.1} parent=5 // pred_check
      _
    $region42: #{tpu_custom_call.1} parent=5 // pred_check_branch
      %279 = sbr.rel (%p276) target = $region44
    $region43: #{tpu_custom_call.1} parent=5 // pred_region
      %s280 = ssub.s32 %s14, 1
      %p281 = scmp.lt.s32.totalorder %s23, 1
      %s282 = scalar_select %p281, %s23, 1
      %p283 = scmp.lt.s32.totalorder %s24, 0
      %s284 = scalar_select %p283, %s24, 0
      %s285 = sadd.s32 %s284, %s282
      %s286 = smul.addr %s285, 4
      %s287 = scalar_lea.vmem %s0, %s286
      %p288 = pneg %p54
      %p289 = pneg %p51
      %p290 = scmp.lt.s32.totalorder %s23, 1
      %s291 = scalar_select %p290, %s23, 1
      %p292 = scmp.lt.s32.totalorder %s24, 0
      %s293 = scalar_select %p292, %s24, 0
      %s294 = smul.addr %s291, 4
      %s295 = sadd.s32 %s293, %s294
      %s296 = smul.addr %s295, 8
      %s297 = scalar_lea.vmem %s1, %s296
      %p298 = pneg %p82
      %p299 = pneg %p79
      %p300 = pneg %p103
      %p301 = pneg %p100
      %p302 = pneg %p124
      %p303 = pneg %p121
      %p304 = pneg %p145
      %p305 = pneg %p142
      %p306 = pneg %p166
      %p307 = pneg %p163
      %p308 = pneg %p194
      %p309 = pneg %p191
      %p310 = scmp.lt.s32.totalorder %s23, 1
      %s311 = scalar_select %p310, %s23, 1
      %p312 = scmp.lt.s32.totalorder %s24, 0
      %s313 = scalar_select %p312, %s24, 0
      %s314 = smul.addr %s311, 4
      %s315 = sadd.s32 %s313, %s314
      %s316 = smul.addr %s315, 8
      %s317 = scalar_lea.vmem %s6, %s316
      %p318 = pneg %p222
      %p319 = pneg %p219
      %p320 = scmp.lt.s32.totalorder %s23, 1
      %s321 = scalar_select %p320, %s23, 1
      %p322 = scmp.lt.s32.totalorder %s24, 0
      %s323 = scalar_select %p322, %s24, 0
      %s324 = smul.addr %s321, 4
      %s325 = sadd.s32 %s323, %s324
      %s326 = smul.addr %s325, 8
      %s327 = scalar_lea.vmem %s7, %s326
      %p328 = scmp.lt.s32.totalorder %s23, 1
      %s329 = scalar_select %p328, %s23, 1
      %p330 = scmp.lt.s32.totalorder %s24, 0
      %s331 = scalar_select %p330, %s24, 0
      %s332 = sadd.s32 %s331, %s329
      %s333 = smul.addr %s332, 4
      %s334 = scalar_lea.vmem %s0, %s333
      %p335 = scmp.lt.s32.totalorder %s23, 1
      %s336 = scalar_select %p335, %s23, 1
      %p337 = scmp.lt.s32.totalorder %s24, 0
      %s338 = scalar_select %p337, %s24, 0
      %s339 = smul.addr %s336, 4
      %s340 = sadd.s32 %s338, %s339
      %s341 = smul.addr %s340, 8
      %s342 = scalar_lea.vmem %s1, %s341
      %p343 = scmp.lt.s32.totalorder %s23, 1
      %s344 = scalar_select %p343, %s23, 1
      %p345 = scmp.lt.s32.totalorder %s24, 0
      %s346 = scalar_select %p345, %s24, 0
      %s347 = smul.addr %s344, 4
      %s348 = sadd.s32 %s346, %s347
      %s349 = smul.addr %s348, 8
      %s350 = scalar_lea.vmem %s6, %s349
      %p351 = scmp.lt.s32.totalorder %s23, 1
      %s352 = scalar_select %p351, %s23, 1
      %p353 = scmp.lt.s32.totalorder %s24, 0
      %s354 = scalar_select %p353, %s24, 0
      %s355 = smul.addr %s352, 4
      %s356 = sadd.s32 %s354, %s355
      %s357 = smul.addr %s356, 8
      %s358 = scalar_lea.vmem %s7, %s357
      %v359 = vld [vmem:[%s334] sm:$0xf]
      %v360 = vld [vmem:[%s342] sm:$0xff]
      %v361 = vld [vmem:[%s342 + $0x8] sm:$0xff]
      %v362 = vld [vmem:[%s342 + $0x10] sm:$0xff]
      %v363 = vld [vmem:[%s342 + $0x18] sm:$0xff]
      %v364 = vld [vmem:[%s2] sm:$0xff]
      %v365 = vld [vmem:[%s2 + $0x8] sm:$0xff]
      %v366 = vld [vmem:[%s2 + $0x10] sm:$0xff]
      %v367 = vld [vmem:[%s2 + $0x18] sm:$0xff]
      %v368 = vld [vmem:[%s2 + $0x20] sm:$0xff]
      %v369 = vld [vmem:[%s2 + $0x28] sm:$0xff]
      %v370 = vld [vmem:[%s2 + $0x30] sm:$0xff]
      %v371 = vld [vmem:[%s2 + $0x38] sm:$0xff]
      %v372 = vld [vmem:[%s2 + $0x40] sm:$0xff]
      %v373 = vld [vmem:[%s2 + $0x48] sm:$0xff]
      %v374 = vld [vmem:[%s2 + $0x50] sm:$0xff]
      %v375 = vld [vmem:[%s2 + $0x58] sm:$0xff]
      %v376 = vld [vmem:[%s2 + $0x60] sm:$0xff]
      %v377 = vld [vmem:[%s2 + $0x68] sm:$0xff]
      %v378 = vld [vmem:[%s2 + $0x70] sm:$0xff]
      %v379 = vld [vmem:[%s2 + $0x78] sm:$0xff]
      %v380 = vld [vmem:[%s3] sm:$0xff]
      %v381 = vld [vmem:[%s3 + $0x8] sm:$0xff]
      %v382 = vld [vmem:[%s3 + $0x10] sm:$0xff]
      %v383 = vld [vmem:[%s3 + $0x18] sm:$0xff]
      %v384 = vld [vmem:[%s3 + $0x20] sm:$0xff]
      %v385 = vld [vmem:[%s3 + $0x28] sm:$0xff]
      %v386 = vld [vmem:[%s3 + $0x30] sm:$0xff]
      %v387 = vld [vmem:[%s3 + $0x38] sm:$0xff]
      %v388 = vld [vmem:[%s3 + $0x40] sm:$0xff]
      %v389 = vld [vmem:[%s3 + $0x48] sm:$0xff]
      %v390 = vld [vmem:[%s3 + $0x50] sm:$0xff]
      %v391 = vld [vmem:[%s3 + $0x58] sm:$0xff]
      %v392 = vld [vmem:[%s3 + $0x60] sm:$0xff]
      %v393 = vld [vmem:[%s3 + $0x68] sm:$0xff]
      %v394 = vld [vmem:[%s3 + $0x70] sm:$0xff]
      %v395 = vld [vmem:[%s3 + $0x78] sm:$0xff]
      %vm396 = vcmask 261120
      %v398 = vsel %vm396, %v380, 0
      %v401 = vsel %vm396, %v381, 0
      %v404 = vsel %vm396, %v382, 0
      %v407 = vsel %vm396, %v383, 0
      %v410 = vsel %vm396, %v384, 0
      %v413 = vsel %vm396, %v385, 0
      %v416 = vsel %vm396, %v386, 0
      %v419 = vsel %vm396, %v387, 0
      %v422 = vsel %vm396, %v388, 0
      %v425 = vsel %vm396, %v389, 0
      %v428 = vsel %vm396, %v390, 0
      %v431 = vsel %vm396, %v391, 0
      %v434 = vsel %vm396, %v392, 0
      %v437 = vsel %vm396, %v393, 0
      %v440 = vsel %vm396, %v394, 0
      %v443 = vsel %vm396, %v395, 0
      %445 = vmatprep.subr.mxu0 0.0
      %446 = vmatpush1.msra.mxu0 %v360
      %447 = vmatprep.subr.mxu0 0.0
      %448 = vmatpush1.msra.mxu0 %v361
      %449 = vmatprep.subr.mxu0 0.0
      %450 = vmatpush1.msra.mxu0 %v362
      %451 = vmatprep.subr.mxu0 0.0
      %452 = vmatpush1.msra.mxu0 %v363
      %453 = vmatprep.subr.mxu0 0.0
      %454 = vmatpush1.msra.mxu0 0.0
      %455 = vmatprep.subr.mxu0 0.0
      %456 = vmatpush1.msra.mxu0 0.0
      %457 = vmatprep.subr.mxu0 0.0
      %458 = vmatpush1.msra.mxu0 0.0
      %459 = vmatprep.subr.mxu0 0.0
      %460 = vmatpush1.msra.mxu0 0.0
      %461 = vmatprep.subr.mxu0 0.0
      %462 = vmatpush1.msra.mxu0 0.0
      %463 = vmatprep.subr.mxu0 0.0
      %464 = vmatpush1.msra.mxu0 0.0
      %465 = vmatprep.subr.mxu0 0.0
      %466 = vmatpush1.msra.mxu0 0.0
      %467 = vmatprep.subr.mxu0 0.0
      %468 = vmatpush1.msra.mxu0 0.0
      %469 = vmatprep.subr.mxu0 0.0
      %470 = vmatpush1.msra.mxu0 0.0
      %471 = vmatprep.subr.mxu0 0.0
      %472 = vmatpush1.msra.mxu0 0.0
      %473 = vmatprep.subr.mxu0 0.0
      %474 = vmatpush1.msra.mxu0 0.0
      %475 = vmatprep.subr.mxu0 0.0
      %476 = vmatpush1.msra.mxu0 0.0
      %477 = vmatprep.subr.mxu0 0.0
      %478 = vmatpush1.msra.mxu0 0.0
      %479 = vmatprep.subr.mxu0 0.0
      %480 = vmatpush1.msra.mxu0 0.0
      %481 = vmatprep.subr.mxu0 0.0
      %482 = vmatpush1.msra.mxu0 0.0
      %483 = vmatprep.subr.mxu0 0.0
      %484 = vmatpush1.msra.mxu0 0.0
      %485 = vmatprep.subr.mxu0 0.0
      %486 = vmatpush1.msra.mxu0 0.0
      %487 = vmatprep.subr.mxu0 0.0
      %488 = vmatpush1.msra.mxu0 0.0
      %489 = vmatprep.subr.mxu0 0.0
      %490 = vmatpush1.msra.mxu0 0.0
      %491 = vmatprep.subr.mxu0 0.0
      %492 = vmatpush1.msra.mxu0 0.0
      %493 = vmatprep.subr.mxu0 0.0
      %494 = vmatpush1.msra.mxu0 0.0
      %495 = vmatprep.subr.mxu0 0.0
      %496 = vmatpush1.msra.mxu0 0.0
      %497 = vmatprep.subr.mxu0 0.0
      %498 = vmatpush1.msra.mxu0 0.0
      %499 = vmatprep.subr.mxu0 0.0
      %500 = vmatpush1.msra.mxu0 0.0
      %501 = vmatprep.subr.mxu0 0.0
      %502 = vmatpush1.msra.mxu0 0.0
      %503 = vmatprep.subr.mxu0 0.0
      %504 = vmatpush1.msra.mxu0 0.0
      %505 = vmatprep.subr.mxu0 0.0
      %506 = vmatpush1.msra.mxu0 0.0
      %507 = vmatprep.subr.mxu0 0.0
      %508 = vmatpush1.msra.mxu0 0.0
      %509 = vmatprep.mubr.f32.mxu0 0.0
      %510 = vmatmul.mubr.f32.gmra.mrb[0].mxu0 %v398
      %v511 = vpop.f32.mrb[0].mxu0
      %v512 = vadd.f32 0.0, %v511
      %v513 = vpop.f32.mrb[0].mxu0
      %514 = vmatprep.mubr.f32.mxu0 0.0
      %515 = vmatmul.mubr.f32.gmra.mrb[0].mxu0 %v401
      %v516 = vpop.f32.mrb[0].mxu0
      %v517 = vadd.f32 0.0, %v516
      %v518 = vpop.f32.mrb[0].mxu0
      %519 = vmatprep.mubr.f32.mxu0 0.0
      %520 = vmatmul.mubr.f32.gmra.mrb[0].mxu0 %v404
      %v521 = vpop.f32.mrb[0].mxu0
      %v522 = vadd.f32 0.0, %v521
      %v523 = vpop.f32.mrb[0].mxu0
      %524 = vmatprep.mubr.f32.mxu0 0.0
      %525 = vmatmul.mubr.f32.gmra.mrb[0].mxu0 %v407
      %v526 = vpop.f32.mrb[0].mxu0
      %v527 = vadd.f32 0.0, %v526
      %v528 = vpop.f32.mrb[0].mxu0
      %529 = vmatprep.mubr.f32.mxu0 0.0
      %530 = vmatmul.mubr.f32.gmra.mrb[0].mxu0 %v410
      %v531 = vpop.f32.mrb[0].mxu0
      %v532 = vadd.f32 0.0, %v531
      %v533 = vpop.f32.mrb[0].mxu0
      %534 = vmatprep.mubr.f32.mxu0 0.0
      %535 = vmatmul.mubr.f32.gmra.mrb[0].mxu0 %v413
      %v536 = vpop.f32.mrb[0].mxu0
      %v537 = vadd.f32 0.0, %v536
      %v538 = vpop.f32.mrb[0].mxu0
      %539 = vmatprep.mubr.f32.mxu0 0.0
      %540 = vmatmul.mubr.f32.gmra.mrb[0].mxu0 %v416
      %v541 = vpop.f32.mrb[0].mxu0
      %v542 = vadd.f32 0.0, %v541
      %v543 = vpop.f32.mrb[0].mxu0
      %544 = vmatprep.mubr.f32.mxu0 0.0
      %545 = vmatmul.mubr.f32.gmra.mrb[0].mxu0 %v419
      %v546 = vpop.f32.mrb[0].mxu0
      %v547 = vadd.f32 0.0, %v546
      %v548 = vpop.f32.mrb[0].mxu0
      %549 = vmatprep.mubr.f32.mxu0 0.0
      %550 = vmatmul.mubr.f32.gmra.mrb[0].mxu0 %v422
      %v551 = vpop.f32.mrb[0].mxu0
      %v552 = vadd.f32 0.0, %v551
      %v553 = vpop.f32.mrb[0].mxu0
      %554 = vmatprep.mubr.f32.mxu0 0.0
      %555 = vmatmul.mubr.f32.gmra.mrb[0].mxu0 %v425
      %v556 = vpop.f32.mrb[0].mxu0
      %v557 = vadd.f32 0.0, %v556
      %v558 = vpop.f32.mrb[0].mxu0
      %559 = vmatprep.mubr.f32.mxu0 0.0
      %560 = vmatmul.mubr.f32.gmra.mrb[0].mxu0 %v428
      %v561 = vpop.f32.mrb[0].mxu0
      %v562 = vadd.f32 0.0, %v561
      %v563 = vpop.f32.mrb[0].mxu0
      %564 = vmatprep.mubr.f32.mxu0 0.0
      %565 = vmatmul.mubr.f32.gmra.mrb[0].mxu0 %v431
      %v566 = vpop.f32.mrb[0].mxu0
      %v567 = vadd.f32 0.0, %v566
      %v568 = vpop.f32.mrb[0].mxu0
      %569 = vmatprep.mubr.f32.mxu0 0.0
      %570 = vmatmul.mubr.f32.gmra.mrb[0].mxu0 %v434
      %v571 = vpop.f32.mrb[0].mxu0
      %v572 = vadd.f32 0.0, %v571
      %v573 = vpop.f32.mrb[0].mxu0
      %574 = vmatprep.mubr.f32.mxu0 0.0
      %575 = vmatmul.mubr.f32.gmra.mrb[0].mxu0 %v437
      %v576 = vpop.f32.mrb[0].mxu0
      %v577 = vadd.f32 0.0, %v576
      %v578 = vpop.f32.mrb[0].mxu0
      %579 = vmatprep.mubr.f32.mxu0 0.0
      %580 = vmatmul.mubr.f32.gmra.mrb[0].mxu0 %v440
      %v581 = vpop.f32.mrb[0].mxu0
      %v582 = vadd.f32 0.0, %v581
      %v583 = vpop.f32.mrb[0].mxu0
      %584 = vmatprep.mubr.f32.mxu0 0.0
      %585 = vmatmul.mubr.f32.gmra.mrb[0].mxu0 %v443
      %v586 = vpop.f32.mrb[0].mxu0
      %v587 = vadd.f32 0.0, %v586
      %v588 = vpop.f32.mrb[0].mxu0
      %589 = vdwg.mxu0
      %vm590 = vcmask 31744
      %v592 = vsel %vm590, %v364, 0
      %v595 = vsel %vm590, %v365, 0
      %v598 = vsel %vm590, %v366, 0
      %v601 = vsel %vm590, %v367, 0
      %v604 = vsel %vm590, %v368, 0
      %v607 = vsel %vm590, %v369, 0
      %v610 = vsel %vm590, %v370, 0
      %v613 = vsel %vm590, %v371, 0
      %v616 = vsel %vm590, %v372, 0
      %v619 = vsel %vm590, %v373, 0
      %v622 = vsel %vm590, %v374, 0
      %v625 = vsel %vm590, %v375, 0
      %v628 = vsel %vm590, %v376, 0
      %v631 = vsel %vm590, %v377, 0
      %v634 = vsel %vm590, %v378, 0
      %v637 = vsel %vm590, %v379, 0
      %vm639 = vcmask 1043456
      %v641 = vsel %vm639, %v359, 0
      %643 = vmatprep.subr.mxu0 0.0
      %644 = vmatpush1.msra.mxu0 %v641
      %645 = vmatprep.subr.mxu0 0.0
      %646 = vmatpush1.msra.mxu0 0.0
      %647 = vmatprep.subr.mxu0 0.0
      %648 = vmatpush1.msra.mxu0 0.0
      %649 = vmatprep.subr.mxu0 0.0
      %650 = vmatpush1.msra.mxu0 0.0
      %651 = vmatprep.subr.mxu0 0.0
      %652 = vmatpush1.msra.mxu0 0.0
      %653 = vmatprep.subr.mxu0 0.0
      %654 = vmatpush1.msra.mxu0 0.0
      %655 = vmatprep.subr.mxu0 0.0
      %656 = vmatpush1.msra.mxu0 0.0
      %657 = vmatprep.subr.mxu0 0.0
      %658 = vmatpush1.msra.mxu0 0.0
      %659 = vmatprep.subr.mxu0 0.0
      %660 = vmatpush1.msra.mxu0 0.0
      %661 = vmatprep.subr.mxu0 0.0
      %662 = vmatpush1.msra.mxu0 0.0
      %663 = vmatprep.subr.mxu0 0.0
      %664 = vmatpush1.msra.mxu0 0.0
      %665 = vmatprep.subr.mxu0 0.0
      %666 = vmatpush1.msra.mxu0 0.0
      %667 = vmatprep.subr.mxu0 0.0
      %668 = vmatpush1.msra.mxu0 0.0
      %669 = vmatprep.subr.mxu0 0.0
      %670 = vmatpush1.msra.mxu0 0.0
      %671 = vmatprep.subr.mxu0 0.0
      %672 = vmatpush1.msra.mxu0 0.0
      %673 = vmatprep.subr.mxu0 0.0
      %674 = vmatpush1.msra.mxu0 0.0
      %675 = vmatprep.subr.mxu0 0.0
      %676 = vmatpush1.msra.mxu0 0.0
      %677 = vmatprep.subr.mxu0 0.0
      %678 = vmatpush1.msra.mxu0 0.0
      %679 = vmatprep.subr.mxu0 0.0
      %680 = vmatpush1.msra.mxu0 0.0
      %681 = vmatprep.subr.mxu0 0.0
      %682 = vmatpush1.msra.mxu0 0.0
      %683 = vmatprep.subr.mxu0 0.0
      %684 = vmatpush1.msra.mxu0 0.0
      %685 = vmatprep.subr.mxu0 0.0
      %686 = vmatpush1.msra.mxu0 0.0
      %687 = vmatprep.subr.mxu0 0.0
      %688 = vmatpush1.msra.mxu0 0.0
      %689 = vmatprep.subr.mxu0 0.0
      %690 = vmatpush1.msra.mxu0 0.0
      %691 = vmatprep.subr.mxu0 0.0
      %692 = vmatpush1.msra.mxu0 0.0
      %693 = vmatprep.subr.mxu0 0.0
      %694 = vmatpush1.msra.mxu0 0.0
      %695 = vmatprep.subr.mxu0 0.0
      %696 = vmatpush1.msra.mxu0 0.0
      %697 = vmatprep.subr.mxu0 0.0
      %698 = vmatpush1.msra.mxu0 0.0
      %699 = vmatprep.subr.mxu0 0.0
      %700 = vmatpush1.msra.mxu0 0.0
      %701 = vmatprep.subr.mxu0 0.0
      %702 = vmatpush1.msra.mxu0 0.0
      %703 = vmatprep.subr.mxu0 0.0
      %704 = vmatpush1.msra.mxu0 0.0
      %705 = vmatprep.subr.mxu0 0.0
      %706 = vmatpush1.msra.mxu0 0.0
      %707 = vmatprep.mubr.f32.mxu0 0.0
      %708 = vmatmul.mubr.f32.gmra.mrb[0].mxu0 %v592
      %v709 = vpop.f32.mrb[0].mxu0
      %v710 = vadd.f32 %v512, %v709
      %v711 = vpop.f32.mrb[0].mxu0
      %712 = vmatprep.mubr.f32.mxu0 0.0
      %713 = vmatmul.mubr.f32.gmra.mrb[0].mxu0 %v595
      %v714 = vpop.f32.mrb[0].mxu0
      %v715 = vadd.f32 %v517, %v714
      %v716 = vpop.f32.mrb[0].mxu0
      %717 = vmatprep.mubr.f32.mxu0 0.0
      %718 = vmatmul.mubr.f32.gmra.mrb[0].mxu0 %v598
      %v719 = vpop.f32.mrb[0].mxu0
      %v720 = vadd.f32 %v522, %v719
      %v721 = vpop.f32.mrb[0].mxu0
      %722 = vmatprep.mubr.f32.mxu0 0.0
      %723 = vmatmul.mubr.f32.gmra.mrb[0].mxu0 %v601
      %v724 = vpop.f32.mrb[0].mxu0
      %v725 = vadd.f32 %v527, %v724
      %v726 = vpop.f32.mrb[0].mxu0
      %727 = vmatprep.mubr.f32.mxu0 0.0
      %728 = vmatmul.mubr.f32.gmra.mrb[0].mxu0 %v604
      %v729 = vpop.f32.mrb[0].mxu0
      %v730 = vadd.f32 %v532, %v729
      %v731 = vpop.f32.mrb[0].mxu0
      %732 = vmatprep.mubr.f32.mxu0 0.0
      %733 = vmatmul.mubr.f32.gmra.mrb[0].mxu0 %v607
      %v734 = vpop.f32.mrb[0].mxu0
      %v735 = vadd.f32 %v537, %v734
      %v736 = vpop.f32.mrb[0].mxu0
      %737 = vmatprep.mubr.f32.mxu0 0.0
      %738 = vmatmul.mubr.f32.gmra.mrb[0].mxu0 %v610
      %v739 = vpop.f32.mrb[0].mxu0
      %v740 = vadd.f32 %v542, %v739
      %v741 = vpop.f32.mrb[0].mxu0
      %742 = vmatprep.mubr.f32.mxu0 0.0
      %743 = vmatmul.mubr.f32.gmra.mrb[0].mxu0 %v613
      %v744 = vpop.f32.mrb[0].mxu0
      %v745 = vadd.f32 %v547, %v744
      %v746 = vpop.f32.mrb[0].mxu0
      %747 = vmatprep.mubr.f32.mxu0 0.0
      %748 = vmatmul.mubr.f32.gmra.mrb[0].mxu0 %v616
      %v749 = vpop.f32.mrb[0].mxu0
      %v750 = vadd.f32 %v552, %v749
      %v751 = vpop.f32.mrb[0].mxu0
      %752 = vmatprep.mubr.f32.mxu0 0.0
      %753 = vmatmul.mubr.f32.gmra.mrb[0].mxu0 %v619
      %v754 = vpop.f32.mrb[0].mxu0
      %v755 = vadd.f32 %v557, %v754
      %v756 = vpop.f32.mrb[0].mxu0
      %757 = vmatprep.mubr.f32.mxu0 0.0
      %758 = vmatmul.mubr.f32.gmra.mrb[0].mxu0 %v622
      %v759 = vpop.f32.mrb[0].mxu0
      %v760 = vadd.f32 %v562, %v759
      %v761 = vpop.f32.mrb[0].mxu0
      %762 = vmatprep.mubr.f32.mxu0 0.0
      %763 = vmatmul.mubr.f32.gmra.mrb[0].mxu0 %v625
      %v764 = vpop.f32.mrb[0].mxu0
      %v765 = vadd.f32 %v567, %v764
      %v766 = vpop.f32.mrb[0].mxu0
      %767 = vmatprep.mubr.f32.mxu0 0.0
      %768 = vmatmul.mubr.f32.gmra.mrb[0].mxu0 %v628
      %v769 = vpop.f32.mrb[0].mxu0
      %v770 = vadd.f32 %v572, %v769
      %v771 = vpop.f32.mrb[0].mxu0
      %772 = vmatprep.mubr.f32.mxu0 0.0
      %773 = vmatmul.mubr.f32.gmra.mrb[0].mxu0 %v631
      %v774 = vpop.f32.mrb[0].mxu0
      %v775 = vadd.f32 %v577, %v774
      %v776 = vpop.f32.mrb[0].mxu0
      %777 = vmatprep.mubr.f32.mxu0 0.0
      %778 = vmatmul.mubr.f32.gmra.mrb[0].mxu0 %v634
      %v779 = vpop.f32.mrb[0].mxu0
      %v780 = vadd.f32 %v582, %v779
      %v781 = vpop.f32.mrb[0].mxu0
      %782 = vmatprep.mubr.f32.mxu0 0.0
      %783 = vmatmul.mubr.f32.gmra.mrb[0].mxu0 %v637
      %v784 = vpop.f32.mrb[0].mxu0
      %v785 = vadd.f32 %v587, %v784
      %v786 = vpop.f32.mrb[0].mxu0
      %787 = vdwg.mxu0
      %v788 = vld [vmem:[%s5] sm:$0xff]
      %v789 = vld [vmem:[%s5 + $0x8] sm:$0xff]
      %v790 = vld [vmem:[%s5 + $0x10] sm:$0xff]
      %v791 = vld [vmem:[%s5 + $0x18] sm:$0xff]
      %v792 = vld [vmem:[%s5 + $0x20] sm:$0xff]
      %v793 = vld [vmem:[%s5 + $0x28] sm:$0xff]
      %v794 = vld [vmem:[%s5 + $0x30] sm:$0xff]
      %v795 = vld [vmem:[%s5 + $0x38] sm:$0xff]
      %v796 = vld [vmem:[%s5 + $0x40] sm:$0xff]
      %v797 = vld [vmem:[%s5 + $0x48] sm:$0xff]
      %v798 = vld [vmem:[%s5 + $0x50] sm:$0xff]
      %v799 = vld [vmem:[%s5 + $0x58] sm:$0xff]
      %v800 = vld [vmem:[%s5 + $0x60] sm:$0xff]
      %v801 = vld [vmem:[%s5 + $0x68] sm:$0xff]
      %v802 = vld [vmem:[%s5 + $0x70] sm:$0xff]
      %v803 = vld [vmem:[%s5 + $0x78] sm:$0xff]
      %805 = vset.pattern.permute.xlu0 0
      %806 = vperm.xlu0 %805, %v788
      %v807 = vpop.permute.xlu0 %806
      %810 = vset.pattern.permute.xlu0 0
      %811 = vperm.xlu0 %810, %v789
      %v812 = vpop.permute.xlu0 %811
      %815 = vset.pattern.permute.xlu0 0
      %816 = vperm.xlu0 %815, %v790
      %v817 = vpop.permute.xlu0 %816
      %820 = vset.pattern.permute.xlu0 0
      %821 = vperm.xlu0 %820, %v791
      %v822 = vpop.permute.xlu0 %821
      %825 = vset.pattern.permute.xlu0 0
      %826 = vperm.xlu0 %825, %v792
      %v827 = vpop.permute.xlu0 %826
      %830 = vset.pattern.permute.xlu0 0
      %831 = vperm.xlu0 %830, %v793
      %v832 = vpop.permute.xlu0 %831
      %835 = vset.pattern.permute.xlu0 0
      %836 = vperm.xlu0 %835, %v794
      %v837 = vpop.permute.xlu0 %836
      %840 = vset.pattern.permute.xlu0 0
      %841 = vperm.xlu0 %840, %v795
      %v842 = vpop.permute.xlu0 %841
      %845 = vset.pattern.permute.xlu0 0
      %846 = vperm.xlu0 %845, %v796
      %v847 = vpop.permute.xlu0 %846
      %850 = vset.pattern.permute.xlu0 0
      %851 = vperm.xlu0 %850, %v797
      %v852 = vpop.permute.xlu0 %851
      %855 = vset.pattern.permute.xlu0 0
      %856 = vperm.xlu0 %855, %v798
      %v857 = vpop.permute.xlu0 %856
      %860 = vset.pattern.permute.xlu0 0
      %861 = vperm.xlu0 %860, %v799
      %v862 = vpop.permute.xlu0 %861
      %865 = vset.pattern.permute.xlu0 0
      %866 = vperm.xlu0 %865, %v800
      %v867 = vpop.permute.xlu0 %866
      %870 = vset.pattern.permute.xlu0 0
      %871 = vperm.xlu0 %870, %v801
      %v872 = vpop.permute.xlu0 %871
      %875 = vset.pattern.permute.xlu0 0
      %876 = vperm.xlu0 %875, %v802
      %v877 = vpop.permute.xlu0 %876
      %880 = vset.pattern.permute.xlu0 0
      %881 = vperm.xlu0 %880, %v803
      %v882 = vpop.permute.xlu0 %881
      %v884 = vadd.f32 %v710, %v807
      %v885 = vadd.f32 %v715, %v812
      %v886 = vadd.f32 %v720, %v817
      %v887 = vadd.f32 %v725, %v822
      %v888 = vadd.f32 %v730, %v827
      %v889 = vadd.f32 %v735, %v832
      %v890 = vadd.f32 %v740, %v837
      %v891 = vadd.f32 %v745, %v842
      %v892 = vadd.f32 %v750, %v847
      %v893 = vadd.f32 %v755, %v852
      %v894 = vadd.f32 %v760, %v857
      %v895 = vadd.f32 %v765, %v862
      %v896 = vadd.f32 %v770, %v867
      %v897 = vadd.f32 %v775, %v872
      %v898 = vadd.f32 %v780, %v877
      %v899 = vadd.f32 %v785, %v882
      %v900 = vxor.u32 %v884, 2147483648
      %v901 = vxor.u32 %v885, 2147483648
      %v902 = vxor.u32 %v886, 2147483648
      %v903 = vxor.u32 %v887, 2147483648
      %v904 = vmul.f32 %v900, 1.442695
      %v905 = vpow.pop %v904
      %v906 = vmul.f32 %v901, 1.442695
      %v907 = vpow.pop %v906
      %v908 = vmul.f32 %v902, 1.442695
      %v909 = vpow.pop %v908
      %v910 = vmul.f32 %v903, 1.442695
      %v911 = vpow.pop %v910
      %v912 = vadd.f32 %v905, 1.0
      %v913 = vadd.f32 %v907, 1.0
      %v914 = vadd.f32 %v909, 1.0
      %v915 = vadd.f32 %v911, 1.0
      %v916 = vrcp.pop %v912
      %v917 = vmul.f32 1.0, %v916
      %v918 = vrcp.pop %v913
      %v919 = vmul.f32 1.0, %v918
      %v920 = vrcp.pop %v914
      %v921 = vmul.f32 1.0, %v920
      %v922 = vrcp.pop %v915
      %v923 = vmul.f32 1.0, %v922
      %v924 = vld [vmem:[%s4] sm:$0xff]
      %v925 = vld [vmem:[%s4 + $0x8] sm:$0xff]
      %v926 = vld [vmem:[%s4 + $0x10] sm:$0xff]
      %v927 = vld [vmem:[%s4 + $0x18] sm:$0xff]
      %v928 = vld [vmem:[%s4 + $0x20] sm:$0xff]
      %v929 = vld [vmem:[%s4 + $0x28] sm:$0xff]
      %v930 = vld [vmem:[%s4 + $0x30] sm:$0xff]
      %v931 = vld [vmem:[%s4 + $0x38] sm:$0xff]
      %v932 = vld [vmem:[%s4 + $0x40] sm:$0xff]
      %v933 = vld [vmem:[%s4 + $0x48] sm:$0xff]
      %v934 = vld [vmem:[%s4 + $0x50] sm:$0xff]
      %v935 = vld [vmem:[%s4 + $0x58] sm:$0xff]
      %v937 = vsel %vm396, %v924, 0
      %v940 = vsel %vm396, %v925, 0
      %v943 = vsel %vm396, %v926, 0
      %v946 = vsel %vm396, %v927, 0
      %v949 = vsel %vm396, %v928, 0
      %v952 = vsel %vm396, %v929, 0
      %v955 = vsel %vm396, %v930, 0
      %v958 = vsel %vm396, %v931, 0
      %v961 = vsel %vm396, %v932, 0
      %v964 = vsel %vm396, %v933, 0
      %v967 = vsel %vm396, %v934, 0
      %v970 = vsel %vm396, %v935, 0
      %972 = vmatprep.subr.mxu0 0.0
      %973 = vmatpush1.msra.mxu0 %v917
      %974 = vmatprep.subr.mxu0 0.0
      %975 = vmatpush1.msra.mxu0 %v919
      %976 = vmatprep.subr.mxu0 0.0
      %977 = vmatpush1.msra.mxu0 %v921
      %978 = vmatprep.subr.mxu0 0.0
      %979 = vmatpush1.msra.mxu0 %v923
      %980 = vmatprep.subr.mxu0 0.0
      %981 = vmatpush1.msra.mxu0 0.0
      %982 = vmatprep.subr.mxu0 0.0
      %983 = vmatpush1.msra.mxu0 0.0
      %984 = vmatprep.subr.mxu0 0.0
      %985 = vmatpush1.msra.mxu0 0.0
      %986 = vmatprep.subr.mxu0 0.0
      %987 = vmatpush1.msra.mxu0 0.0
      %988 = vmatprep.subr.mxu0 0.0
      %989 = vmatpush1.msra.mxu0 0.0
      %990 = vmatprep.subr.mxu0 0.0
      %991 = vmatpush1.msra.mxu0 0.0
      %992 = vmatprep.subr.mxu0 0.0
      %993 = vmatpush1.msra.mxu0 0.0
      %994 = vmatprep.subr.mxu0 0.0
      %995 = vmatpush1.msra.mxu0 0.0
      %996 = vmatprep.subr.mxu0 0.0
      %997 = vmatpush1.msra.mxu0 0.0
      %998 = vmatprep.subr.mxu0 0.0
      %999 = vmatpush1.msra.mxu0 0.0
      %1000 = vmatprep.subr.mxu0 0.0
      %1001 = vmatpush1.msra.mxu0 0.0
      %1002 = vmatprep.subr.mxu0 0.0
      %1003 = vmatpush1.msra.mxu0 0.0
      %1004 = vmatprep.subr.mxu0 0.0
      %1005 = vmatpush1.msra.mxu0 0.0
      %1006 = vmatprep.subr.mxu0 0.0
      %1007 = vmatpush1.msra.mxu0 0.0
      %1008 = vmatprep.subr.mxu0 0.0
      %1009 = vmatpush1.msra.mxu0 0.0
      %1010 = vmatprep.subr.mxu0 0.0
      %1011 = vmatpush1.msra.mxu0 0.0
      %1012 = vmatprep.subr.mxu0 0.0
      %1013 = vmatpush1.msra.mxu0 0.0
      %1014 = vmatprep.subr.mxu0 0.0
      %1015 = vmatpush1.msra.mxu0 0.0
      %1016 = vmatprep.subr.mxu0 0.0
      %1017 = vmatpush1.msra.mxu0 0.0
      %1018 = vmatprep.subr.mxu0 0.0
      %1019 = vmatpush1.msra.mxu0 0.0
      %1020 = vmatprep.subr.mxu0 0.0
      %1021 = vmatpush1.msra.mxu0 0.0
      %1022 = vmatprep.subr.mxu0 0.0
      %1023 = vmatpush1.msra.mxu0 0.0
      %1024 = vmatprep.subr.mxu0 0.0
      %1025 = vmatpush1.msra.mxu0 0.0
      %1026 = vmatprep.subr.mxu0 0.0
      %1027 = vmatpush1.msra.mxu0 0.0
      %1028 = vmatprep.subr.mxu0 0.0
      %1029 = vmatpush1.msra.mxu0 0.0
      %1030 = vmatprep.subr.mxu0 0.0
      %1031 = vmatpush1.msra.mxu0 0.0
      %1032 = vmatprep.subr.mxu0 0.0
      %1033 = vmatpush1.msra.mxu0 0.0
      %1034 = vmatprep.subr.mxu0 0.0
      %1035 = vmatpush1.msra.mxu0 0.0
      %1036 = vmatprep.mubr.f32.mxu0 0.0
      %1037 = vmatmul.mubr.f32.gmra.mrb[0].mxu0 %v937
      %v1038 = vpop.f32.mrb[0].mxu0
      %v1039 = vadd.f32 0.0, %v1038
      %v1040 = vpop.f32.mrb[0].mxu0
      %1041 = vmatprep.mubr.f32.mxu0 0.0
      %1042 = vmatmul.mubr.f32.gmra.mrb[0].mxu0 %v940
      %v1043 = vpop.f32.mrb[0].mxu0
      %v1044 = vadd.f32 0.0, %v1043
      %v1045 = vpop.f32.mrb[0].mxu0
      %1046 = vmatprep.mubr.f32.mxu0 0.0
      %1047 = vmatmul.mubr.f32.gmra.mrb[0].mxu0 %v943
      %v1048 = vpop.f32.mrb[0].mxu0
      %v1049 = vadd.f32 0.0, %v1048
      %v1050 = vpop.f32.mrb[0].mxu0
      %1051 = vmatprep.mubr.f32.mxu0 0.0
      %1052 = vmatmul.mubr.f32.gmra.mrb[0].mxu0 %v946
      %v1053 = vpop.f32.mrb[0].mxu0
      %v1054 = vadd.f32 0.0, %v1053
      %v1055 = vpop.f32.mrb[0].mxu0
      %1056 = vmatprep.mubr.f32.mxu0 0.0
      %1057 = vmatmul.mubr.f32.gmra.mrb[0].mxu0 %v949
      %v1058 = vpop.f32.mrb[0].mxu0
      %v1059 = vadd.f32 0.0, %v1058
      %v1060 = vpop.f32.mrb[0].mxu0
      %1061 = vmatprep.mubr.f32.mxu0 0.0
      %1062 = vmatmul.mubr.f32.gmra.mrb[0].mxu0 %v952
      %v1063 = vpop.f32.mrb[0].mxu0
      %v1064 = vadd.f32 0.0, %v1063
      %v1065 = vpop.f32.mrb[0].mxu0
      %1066 = vmatprep.mubr.f32.mxu0 0.0
      %1067 = vmatmul.mubr.f32.gmra.mrb[0].mxu0 %v955
      %v1068 = vpop.f32.mrb[0].mxu0
      %v1069 = vadd.f32 0.0, %v1068
      %v1070 = vpop.f32.mrb[0].mxu0
      %1071 = vmatprep.mubr.f32.mxu0 0.0
      %1072 = vmatmul.mubr.f32.gmra.mrb[0].mxu0 %v958
      %v1073 = vpop.f32.mrb[0].mxu0
      %v1074 = vadd.f32 0.0, %v1073
      %v1075 = vpop.f32.mrb[0].mxu0
      %1076 = vmatprep.mubr.f32.mxu0 0.0
      %1077 = vmatmul.mubr.f32.gmra.mrb[0].mxu0 %v961
      %v1078 = vpop.f32.mrb[0].mxu0
      %v1079 = vadd.f32 0.0, %v1078
      %v1080 = vpop.f32.mrb[0].mxu0
      %1081 = vmatprep.mubr.f32.mxu0 0.0
      %1082 = vmatmul.mubr.f32.gmra.mrb[0].mxu0 %v964
      %v1083 = vpop.f32.mrb[0].mxu0
      %v1084 = vadd.f32 0.0, %v1083
      %v1085 = vpop.f32.mrb[0].mxu0
      %1086 = vmatprep.mubr.f32.mxu0 0.0
      %1087 = vmatmul.mubr.f32.gmra.mrb[0].mxu0 %v967
      %v1088 = vpop.f32.mrb[0].mxu0
      %v1089 = vadd.f32 0.0, %v1088
      %v1090 = vpop.f32.mrb[0].mxu0
      %1091 = vmatprep.mubr.f32.mxu0 0.0
      %1092 = vmatmul.mubr.f32.gmra.mrb[0].mxu0 %v970
      %v1093 = vpop.f32.mrb[0].mxu0
      %v1094 = vadd.f32 0.0, %v1093
      %v1095 = vpop.f32.mrb[0].mxu0
      %1096 = vdwg.mxu0
      %v1097 = vadd.f32 %v888, %v1039
      %v1098 = vadd.f32 %v889, %v1044
      %v1099 = vadd.f32 %v890, %v1049
      %v1100 = vadd.f32 %v891, %v1054
      %v1101 = vadd.f32 %v892, %v1059
      %v1102 = vadd.f32 %v893, %v1064
      %v1103 = vadd.f32 %v894, %v1069
      %v1104 = vadd.f32 %v895, %v1074
      %v1105 = vadd.f32 %v896, %v1079
      %v1106 = vadd.f32 %v897, %v1084
      %v1107 = vadd.f32 %v898, %v1089
      %v1108 = vadd.f32 %v899, %v1094
      %v1109 = vxor.u32 %v1097, 2147483648
      %v1110 = vxor.u32 %v1098, 2147483648
      %v1111 = vxor.u32 %v1099, 2147483648
      %v1112 = vxor.u32 %v1100, 2147483648
      %v1113 = vxor.u32 %v1101, 2147483648
      %v1114 = vxor.u32 %v1102, 2147483648
      %v1115 = vxor.u32 %v1103, 2147483648
      %v1116 = vxor.u32 %v1104, 2147483648
      %v1117 = vxor.u32 %v1105, 2147483648
      %v1118 = vxor.u32 %v1106, 2147483648
      %v1119 = vxor.u32 %v1107, 2147483648
      %v1120 = vxor.u32 %v1108, 2147483648
      %v1121 = vmul.f32 %v1109, 1.442695
      %v1122 = vpow.pop %v1121
      %v1123 = vmul.f32 %v1110, 1.442695
      %v1124 = vpow.pop %v1123
      %v1125 = vmul.f32 %v1111, 1.442695
      %v1126 = vpow.pop %v1125
      %v1127 = vmul.f32 %v1112, 1.442695
      %v1128 = vpow.pop %v1127
      %v1129 = vmul.f32 %v1113, 1.442695
      %v1130 = vpow.pop %v1129
      %v1131 = vmul.f32 %v1114, 1.442695
      %v1132 = vpow.pop %v1131
      %v1133 = vmul.f32 %v1115, 1.442695
      %v1134 = vpow.pop %v1133
      %v1135 = vmul.f32 %v1116, 1.442695
      %v1136 = vpow.pop %v1135
      %v1137 = vmul.f32 %v1117, 1.442695
      %v1138 = vpow.pop %v1137
      %v1139 = vmul.f32 %v1118, 1.442695
      %v1140 = vpow.pop %v1139
      %v1141 = vmul.f32 %v1119, 1.442695
      %v1142 = vpow.pop %v1141
      %v1143 = vmul.f32 %v1120, 1.442695
      %v1144 = vpow.pop %v1143
      %v1145 = vadd.f32 %v1122, 1.0
      %v1146 = vadd.f32 %v1124, 1.0
      %v1147 = vadd.f32 %v1126, 1.0
      %v1148 = vadd.f32 %v1128, 1.0
      %v1149 = vadd.f32 %v1130, 1.0
      %v1150 = vadd.f32 %v1132, 1.0
      %v1151 = vadd.f32 %v1134, 1.0
      %v1152 = vadd.f32 %v1136, 1.0
      %v1153 = vadd.f32 %v1138, 1.0
      %v1154 = vadd.f32 %v1140, 1.0
      %v1155 = vadd.f32 %v1142, 1.0
      %v1156 = vadd.f32 %v1144, 1.0
      %v1157 = vrcp.pop %v1145
      %v1158 = vmul.f32 1.0, %v1157
      %v1159 = vrcp.pop %v1146
      %v1160 = vmul.f32 1.0, %v1159
      %v1161 = vrcp.pop %v1147
      %v1162 = vmul.f32 1.0, %v1161
      %v1163 = vrcp.pop %v1148
      %v1164 = vmul.f32 1.0, %v1163
      %v1165 = vrcp.pop %v1149
      %v1166 = vmul.f32 1.0, %v1165
      %v1167 = vrcp.pop %v1150
      %v1168 = vmul.f32 1.0, %v1167
      %v1169 = vrcp.pop %v1151
      %v1170 = vmul.f32 1.0, %v1169
      %v1171 = vrcp.pop %v1152
      %v1172 = vmul.f32 1.0, %v1171
      %v1173 = vrcp.pop %v1153
      %v1174 = vmul.f32 1.0, %v1173
      %v1175 = vrcp.pop %v1154
      %v1176 = vmul.f32 1.0, %v1175
      %v1177 = vrcp.pop %v1155
      %v1178 = vmul.f32 1.0, %v1177
      %v1179 = vrcp.pop %v1156
      %v1180 = vmul.f32 1.0, %v1179
      %vm1181 = vcmask 130048
      %1182 = vst.msk [vmem:[%s350] sm:$0xff] %vm1181, %v1166
      %1183 = vst.msk [vmem:[%s350 + $0x8] sm:$0xff] %vm1181, %v1168
      %1184 = vst.msk [vmem:[%s350 + $0x10] sm:$0xff] %vm1181, %v1170
      %1185 = vst.msk [vmem:[%s350 + $0x18] sm:$0xff] %vm1181, %v1172
      %v1186 = vadd.f32 %v1158, %v1166
      %v1187 = vadd.f32 %v1160, %v1168
      %v1188 = vadd.f32 %v1162, %v1170
      %v1189 = vadd.f32 %v1164, %v1172
      %v1190 = vadd.f32 %v1186, %v1174
      %v1191 = vadd.f32 %v1187, %v1176
      %v1192 = vadd.f32 %v1188, %v1178
      %v1193 = vadd.f32 %v1189, %v1180
      %1194 = vst.msk [vmem:[%s358] sm:$0xff] %vm1181, %v1190
      %1195 = vst.msk [vmem:[%s358 + $0x8] sm:$0xff] %vm1181, %v1191
      %1196 = vst.msk [vmem:[%s358 + $0x10] sm:$0xff] %vm1181, %v1192
      %1197 = vst.msk [vmem:[%s358 + $0x18] sm:$0xff] %vm1181, %v1193
      %p1198 = scmp.lt.s32.totalorder %s23, 1
      %s1199 = scalar_select %p1198, %s23, 1
      %p1200 = scmp.lt.s32.totalorder %s24, 0
      %s1201 = scalar_select %p1200, %s24, 0
      %s1202 = smul.addr %s1199, 4
      %s1203 = sadd.s32 %s1201, %s1202
      %s1204 = smul.addr %s1203, 8
      %s1205 = scalar_lea.vmem %s6, %s1204
      %p1206 = scmp.lt.s32.totalorder %s23, 1
      %s1207 = scalar_select %p1206, %s23, 1
      %p1208 = scmp.lt.s32.totalorder %s24, 0
      %s1209 = scalar_select %p1208, %s24, 0
      %s1210 = smul.addr %s1207, 4
      %s1211 = sadd.s32 %s1209, %s1210
      %s1212 = smul.addr %s1211, 8
      %s1213 = scalar_lea.vmem %s7, %s1212
      // Predicated region
      $region45: #{tpu_custom_call.1} parent=43 // pred_check
        %p1214 = pneg %p191
      $region46: #{tpu_custom_call.1} parent=43 // pred_check_branch
        %1216 = sbr.rel (%p1214) target = $region48
      $region47: #{tpu_custom_call.1} parent=43 // pred_region
        _
      $region48: #{tpu_custom_call.1} parent=43 // pred_fallthru
        _
      // Predicated region
      $region49: #{tpu_custom_call.1} parent=43 // pred_check
        %p1217 = pneg %p219
      $region50: #{tpu_custom_call.1} parent=43 // pred_check_branch
        %1219 = sbr.rel (%p1217) target = $region52
      $region51: #{tpu_custom_call.1} parent=43 // pred_region
        _
      $region52: #{tpu_custom_call.1} parent=43 // pred_fallthru
        _
    $region44: #{tpu_custom_call.1} parent=5 // pred_fallthru
      _
    %p1220 = scmp.le.s32.totalorder 2, %s14
    // Predicated region
    $region53: #{tpu_custom_call.1} parent=5 // pred_check
      %p1221 = pneg %p1220
    $region54: #{tpu_custom_call.1} parent=5 // pred_check_branch
      %1223 = sbr.rel (%p1221) target = $region56
    $region55: #{tpu_custom_call.1} parent=5 // pred_region
      %s1224 = ssub.s32 %s14, 2
      // Predicated region
      $region57: #{tpu_custom_call.1} parent=55 // pred_check
        %p1225 = pneg %p197
      $region58: #{tpu_custom_call.1} parent=55 // pred_check_branch
        %1227 = sbr.rel (%p1225) target = $region60
      $region59: #{tpu_custom_call.1} parent=55 // pred_region
        %p1228 = scmp.lt.s32.totalorder %s25, 1
        %s1229 = scalar_select %p1228, %s25, 1
        %p1230 = scmp.lt.s32.totalorder %s26, 0
        %s1231 = scalar_select %p1230, %s26, 0
        %s1232 = smul.addr %s1229, 4
        %s1233 = sadd.s32 %s1231, %s1232
        %s1234 = smul.addr %s1233, 8
        %s1235 = scalar_lea.vmem %s6, %s1234
      $region60: #{tpu_custom_call.1} parent=55 // pred_fallthru
        _
      // Predicated region
      $region61: #{tpu_custom_call.1} parent=55 // pred_check
        %p1236 = pneg %p225
      $region62: #{tpu_custom_call.1} parent=55 // pred_check_branch
        %1238 = sbr.rel (%p1236) target = $region64
      $region63: #{tpu_custom_call.1} parent=55 // pred_region
        %p1239 = scmp.lt.s32.totalorder %s25, 1
        %s1240 = scalar_select %p1239, %s25, 1
        %p1241 = scmp.lt.s32.totalorder %s26, 0
        %s1242 = scalar_select %p1241, %s26, 0
        %s1243 = smul.addr %s1240, 4
        %s1244 = sadd.s32 %s1242, %s1243
        %s1245 = smul.addr %s1244, 8
        %s1246 = scalar_lea.vmem %s7, %s1245
      $region64: #{tpu_custom_call.1} parent=55 // pred_fallthru
        _
    $region56: #{tpu_custom_call.1} parent=5 // pred_fallthru
      _
  $region6: #{tpu_custom_call.1} parent=0 // loop_footer
    %s18 = sadd.s32 1, %s14
  $region7: #{tpu_custom_call.1} parent=0 // loop_footer_branch
    %13 = sbr.rel target = $region3
  $region8: #{tpu_custom_call.1} parent=0 // loop_exit
    _

</llo_original>
